<compile_context>
chip_gen: v5e
topology: v5e:2x2
jax: 0.10.0
libtpu: 0.0.40
codegen_flags: <defaults>
</compile_context>

<pallas_src>
import jax
import jax.numpy as jnp
from jax.experimental import pallas as pl
from jax.experimental.pallas import tpu as pltpu

IN_FEAT = 512
NUM_CLASSES = 5
LOSS_WEIGHT = 1.0

C_PAD = 128            # lane-dense class dimension (do NOT pad to 256; HBM/overhead bound)
NEG_PAD_BIAS = -1e30   # finite "never wins" bias for padded classes
TILE_B_MAX = 2048      # batch rows per grid step (8 MiB double-buffered x stream at f32)
VMEM_LIMIT_BYTES = 32 * 1024 * 1024  # explicit scoped-VMEM limit (safe on v5e/v6e/v7x)


def prepare_params(weight, bias, *, compute_dtype=jnp.float32):
    """One-time parameter setup (outside the hot path).

    weight: [C, D], bias: [C]  ->  w_pad: [D, C_PAD] (compute_dtype), b_pad: [1, C_PAD] f32.
    """
    c, d = weight.shape
    w_pad = jnp.zeros((d, C_PAD), compute_dtype).at[:, :c].set(
        weight.T.astype(compute_dtype))
    b_pad = jnp.full((1, C_PAD), NEG_PAD_BIAS, jnp.float32).at[:, :c].set(
        bias.astype(jnp.float32))
    return w_pad, b_pad


def _batch_tiling(batch):
    """(tile_b, num_blocks) — big tiles, cdiv grid, tail handled by masked writes."""
    if batch <= TILE_B_MAX:
        return batch, 1            # single full-extent tile (always a legal block shape)
    return TILE_B_MAX, pl.cdiv(batch, TILE_B_MAX)


def _ce_nll_kernel(x_ref, w_ref, b_ref, t_ref, nll_ref):
    """One batch tile: logits -> logsumexp -> target pick -> per-row NLL column."""
    x = x_ref[...]                                                    # [TB, D]
    w = w_ref[...]                                                    # [D, 128] (resident)
    b = b_ref[...]                                                    # [1, 128] (pads = -1e30)
    logits = jnp.dot(x, w, preferred_element_type=jnp.float32) + b    # [TB, 128] f32 (MXU)

    m = jnp.max(logits, axis=-1, keepdims=True)                       # [TB, 1]
    lse = m + jnp.log(jnp.sum(jnp.exp(logits - m), axis=-1, keepdims=True))

    tgt = t_ref[...]                                                  # [TB, 1] int32 (VMEM)
    cls = jax.lax.broadcasted_iota(jnp.int32, logits.shape, 1)        # [TB, 128]
    tgt_logit = jnp.sum(jnp.where(cls == tgt, logits, 0.0),
                        axis=-1, keepdims=True)                       # [TB, 1]

    nll_ref[...] = lse - tgt_logit                                    # per-row NLL


def _linear_kernel(x_ref, w_ref, b_ref, out_ref):
    """Eval path: lane-dense padded logits tile."""
    out_ref[...] = (jnp.dot(x_ref[...], w_ref[...],
                            preferred_element_type=jnp.float32)
                    + b_ref[...]).astype(out_ref.dtype)


def cross_entroy_forward(x, w_pad, b_pad, targets=None, *,
                         num_classes=NUM_CLASSES, training=True,
                         loss_weight=LOSS_WEIGHT, return_padded_logits=False):
    """Mirror of CrossEntroy.forward.

    x: [B, D] (f32 or bf16 to match w_pad).  w_pad/b_pad from prepare_params.
    Training: returns scalar mean cross-entropy * loss_weight.
    Eval: logits [B, num_classes] (or [B, C_PAD] if return_padded_logits=True).
    """
    B, D = x.shape
    tb, nb = _batch_tiling(B)
    cparams = pltpu.CompilerParams(
        dimension_semantics=("parallel",),          # shards across v7x's 2 TCs
        vmem_limit_bytes=VMEM_LIMIT_BYTES)

    if training:
        t2d = targets.astype(jnp.int32).reshape(B, 1)
        nll = pl.pallas_call(
            _ce_nll_kernel,
            grid=(nb,),
            in_specs=[
                pl.BlockSpec((tb, D), lambda i: (i, 0)),        # x tile
                pl.BlockSpec((D, C_PAD), lambda i: (0, 0)),     # weight (constant block)
                pl.BlockSpec((1, C_PAD), lambda i: (0, 0)),     # bias   (constant block)
                pl.BlockSpec((tb, 1), lambda i: (i, 0)),        # targets tile
            ],
            out_specs=pl.BlockSpec((tb, 1), lambda i: (i, 0)),  # per-row NLL
            out_shape=jax.ShapeDtypeStruct((B, 1), jnp.float32),
            compiler_params=cparams,
        )(x, w_pad, b_pad, t2d)
        # Tiny final reduce (B f32 values) + scale in the wrapper; tail-tile padding rows
        # were never written (Pallas masks out-of-range output stores).
        return jnp.sum(nll) * jnp.float32(loss_weight / B)
    else:
        logits_pad = pl.pallas_call(
            _linear_kernel,
            grid=(nb,),
            in_specs=[
                pl.BlockSpec((tb, D), lambda i: (i, 0)),
                pl.BlockSpec((D, C_PAD), lambda i: (0, 0)),
                pl.BlockSpec((1, C_PAD), lambda i: (0, 0)),
            ],
            out_specs=pl.BlockSpec((tb, C_PAD), lambda i: (i, 0)),
            out_shape=jax.ShapeDtypeStruct((B, C_PAD), jnp.float32),
            compiler_params=cparams,
        )(x, w_pad, b_pad)
        if return_padded_logits:
            return logits_pad                      # consumer reads lane-dense buffer
        return logits_pad[:, :num_classes]


if __name__ == "__main__":
    key = jax.random.PRNGKey(0)
    k_x, k_w, k_b, k_t = jax.random.split(key, 4)

    B = 8
    # Deterministic parameter init (matches nn.Linear's U(-1/sqrt(D), 1/sqrt(D)) scheme).
    bound = 1.0 / (IN_FEAT ** 0.5)
    W = jax.random.uniform(k_w, (NUM_CLASSES, IN_FEAT), jnp.float32, -bound, bound)
    bparam = jax.random.uniform(k_b, (NUM_CLASSES,), jnp.float32, -bound, bound)

    x = jax.random.normal(k_x, (B, IN_FEAT), jnp.float32)
    targets = jax.random.randint(k_t, (B,), 0, NUM_CLASSES, jnp.int32)

    # One-time parameter prep (outside the hot path): transpose + lane-pad class dim.
    # For extra bandwidth, use compute_dtype=jnp.bfloat16 and feed x as bf16.
    w_pad, b_pad = prepare_params(W, bparam, compute_dtype=x.dtype)

    # Training path: scalar mean cross-entropy loss.
    loss = cross_entroy_forward(x, w_pad, b_pad, targets, training=True)
    loss = jax.block_until_ready(loss)

    # Eval path: logits [B, C].
    logits = cross_entroy_forward(x, w_pad, b_pad, training=False)
    logits = jax.block_until_ready(logits)

    # Pure-JAX reference check.
    ref_logits = x @ W.T + bparam
    ref_lse = jax.nn.logsumexp(ref_logits, axis=-1)
    ref_loss = jnp.mean(ref_lse - ref_logits[jnp.arange(B), targets]) * LOSS_WEIGHT
    assert jnp.allclose(loss, ref_loss, atol=1e-5, rtol=1e-5), (loss, ref_loss)
    assert jnp.allclose(logits, ref_logits, atol=1e-5, rtol=1e-5)

    print("KERNEL_OK")
</pallas_src>

<mosaic_0001>
module attributes {stable_mosaic.version = 11 : i64} {
  func.func @_ce_nll_kernel(%arg0: i32, %arg1: memref<8x512xf32, #tpu.memory_space<vmem>>, %arg2: memref<512x128xf32, #tpu.memory_space<vmem>>, %arg3: memref<1x128xf32, #tpu.memory_space<vmem>>, %arg4: memref<8x1xi32, #tpu.memory_space<vmem>>, %arg5: memref<8x1xf32, #tpu.memory_space<vmem>>) attributes {dimension_semantics = [#tpu.dimension_semantics<parallel>], iteration_bounds = array<i64: 1>, scalar_prefetch = 0 : i64, scratch_operands = 0 : i64, tpu.core_type = #tpu.core_type<tc>, window_params = [{transform_indices = @transform_0, window_bounds = array<i64: 8, 512>}, {pipeline_mode = #tpu.pipeline_mode<synchronous>, transform_indices = @transform_1, window_bounds = array<i64: 512, 128>}, {pipeline_mode = #tpu.pipeline_mode<synchronous>, transform_indices = @transform_2, window_bounds = array<i64: 1, 128>}, {transform_indices = @transform_3, window_bounds = array<i64: 8, 1>}, {transform_indices = @transform_4, window_bounds = array<i64: 8, 1>}]} {
    %c0 = arith.constant 0 : index
    %c0_0 = arith.constant 0 : index
    %0 = vector.load %arg1[%c0, %c0_0] : memref<8x512xf32, #tpu.memory_space<vmem>>, vector<8x512xf32>
    %c0_1 = arith.constant 0 : index
    %c0_2 = arith.constant 0 : index
    %1 = vector.load %arg2[%c0_1, %c0_2] : memref<512x128xf32, #tpu.memory_space<vmem>>, vector<512x128xf32>
    %c0_3 = arith.constant 0 : index
    %c0_4 = arith.constant 0 : index
    %2 = vector.load %arg3[%c0_3, %c0_4] : memref<1x128xf32, #tpu.memory_space<vmem>>, vector<1x128xf32>
    %cst = arith.constant dense<0.000000e+00> : vector<8x128xf32>
    %3 = tpu.matmul %0, %1, %cst {dimension_numbers = #tpu.dot_dimension_numbers<[1], [0], [0], [1], [0, 0, 1, 1], [], []>} : vector<8x512xf32>, vector<512x128xf32>, vector<8x128xf32> -> vector<8x128xf32>
    %4 = vector.broadcast %2 : vector<1x128xf32> to vector<8x128xf32>
    %5 = arith.addf %3, %4 : vector<8x128xf32>
    %cst_5 = arith.constant dense<0xFF800000> : vector<8xf32>
    %6 = vector.multi_reduction <maximumf>, %5, %cst_5 [1] : vector<8x128xf32> to vector<8xf32>
    %7 = vector.shape_cast %6 : vector<8xf32> to vector<8x1xf32>
    %8 = vector.broadcast %7 : vector<8x1xf32> to vector<8x128xf32>
    %9 = arith.subf %5, %8 : vector<8x128xf32>
    %10 = math.exp %9 : vector<8x128xf32>
    %cst_6 = arith.constant dense<0.000000e+00> : vector<8xf32>
    %11 = vector.multi_reduction <add>, %10, %cst_6 [1] : vector<8x128xf32> to vector<8xf32>
    %12 = vector.shape_cast %11 : vector<8xf32> to vector<8x1xf32>
    %13 = math.log %12 : vector<8x1xf32>
    %14 = arith.addf %7, %13 : vector<8x1xf32>
    %c0_7 = arith.constant 0 : index
    %c0_8 = arith.constant 0 : index
    %15 = vector.load %arg4[%c0_7, %c0_8] : memref<8x1xi32, #tpu.memory_space<vmem>>, vector<8x1xi32>
    %16 = tpu.iota {dimensions = array<i32: 1>} : vector<8x128xi32>
    %17 = vector.broadcast %15 : vector<8x1xi32> to vector<8x128xi32>
    %18 = arith.cmpi eq, %16, %17 : vector<8x128xi32>
    %cst_9 = arith.constant 0.000000e+00 : f32
    %19 = vector.broadcast %cst_9 : f32 to vector<8x128xf32>
    %20 = arith.select %18, %5, %19 : vector<8x128xi1>, vector<8x128xf32>
    %cst_10 = arith.constant dense<0.000000e+00> : vector<8xf32>
    %21 = vector.multi_reduction <add>, %20, %cst_10 [1] : vector<8x128xf32> to vector<8xf32>
    %22 = vector.shape_cast %21 : vector<8xf32> to vector<8x1xf32>
    %23 = arith.subf %14, %22 : vector<8x1xf32>
    %c0_11 = arith.constant 0 : index
    %c0_12 = arith.constant 0 : index
    %24 = vector.load %arg5[%c0_11, %c0_12] : memref<8x1xf32, #tpu.memory_space<vmem>>, vector<8x1xf32>
    tpu.vector_store %arg5[%c0_11, %c0_12], %23 {strides = array<i32>} : memref<8x1xf32, #tpu.memory_space<vmem>>, vector<8x1xf32>,
    return
  }
  func.func @transform_0(%arg0: i32) -> (i32, i32) {
    %c0_i32 = arith.constant 0 : i32
    %c0_i32_0 = arith.constant 0 : i32
    return %arg0, %c0_i32 : i32, i32
  }
  func.func @transform_1(%arg0: i32) -> (i32, i32) {
    %c0_i32 = arith.constant 0 : i32
    %c0_i32_0 = arith.constant 0 : i32
    %c0_i32_1 = arith.constant 0 : i32
    return %c0_i32, %c0_i32_0 : i32, i32
  }
  func.func @transform_2(%arg0: i32) -> (i32, i32) {
    %c0_i32 = arith.constant 0 : i32
    %c0_i32_0 = arith.constant 0 : i32
    %c0_i32_1 = arith.constant 0 : i32
    return %c0_i32, %c0_i32_0 : i32, i32
  }
  func.func @transform_3(%arg0: i32) -> (i32, i32) {
    %c0_i32 = arith.constant 0 : i32
    %c0_i32_0 = arith.constant 0 : i32
    return %arg0, %c0_i32 : i32, i32
  }
  func.func @transform_4(%arg0: i32) -> (i32, i32) {
    %c0_i32 = arith.constant 0 : i32
    %c0_i32_0 = arith.constant 0 : i32
    return %arg0, %c0_i32 : i32, i32
  }
}

</mosaic_0001>

<llo_original>
// kernel: tpu_custom_call.1
$region0: #{tpu_custom_call.1}
  #allocation0 [shape = 'u32[]', space=smem, size = 0x4, offset = 0x4, fixed_abs, tag = 'smem constant byte address 0x4 - core index']
  #allocation1 [shape = 'u32[72,128]{1,0:T(1,128)}', space=vmem, size = 0x9000, scoped, tag = 'internal scratch']
  %s0 = inlined_call_operand.hbm [shape: f32[8,512], index: 0, kind: input, shape index: {}]
  %s1 = inlined_call_operand.hbm [shape: f32[512,128], index: 1, kind: input, shape index: {}]
  %s2 = inlined_call_operand.vmem [shape: f32[1,128], index: 2, kind: input, shape index: {}]
  %s3 = inlined_call_operand.vmem [shape: s32[8,1], index: 3, kind: input, shape index: {}]
  %s4 = inlined_call_operand.vmem [shape: f32[8,1], index: 4, kind: output, shape index: {}]
  %s5 = sld [smem:[#allocation0]]
  $region34: #{tpu_custom_call.1} parent=0
    _
  %s7 = ssub.s32 1, %s5
  %s8 = scalar_select 0, %s7, %s5
  $region1: #{tpu_custom_call.1} parent=0
    #allocation2 [shape = 'u8[16384]{0}', space=vmem, size = 0x4000, scoped, tag = 'input window, operand 0, single buffered']
    #allocation3 [shape = 's32[1]{0}', space=sflag, size = 0x4, scoped, tag = 'scoped memory for tpu_custom_call.1']
    #allocation4 [shape = 'u8[262144]{0}', space=vmem, size = 0x40000, scoped, tag = 'input window, operand 1, single buffered']
    #allocation5 [shape = 's32[1]{0}', space=sflag, size = 0x4, scoped, tag = 'scoped memory for tpu_custom_call.1']
    %9 = vsyncpa [#allocation3], 0
    %10 = vsyncpa [#allocation5], 0
    // Predicated region
    $region2: #{tpu_custom_call.1} parent=1 // pred_check
      _
    $region3: #{tpu_custom_call.1} parent=1 // pred_check_branch
      %12 = sbr.rel (0) target = $region5
    $region4: #{tpu_custom_call.1} parent=1 // pred_region
      %14 = vsyncadd [#allocation3], 0
      %s16 = sshll.u32 %s0, 4
      %s17 = int_to_ptr.hbm [resolvable:$true] %s16
      %s18 = sshll.u32 [#allocation2], 4
      %s19 = int_to_ptr.vmem [resolvable:$true] %s18
      %21 = dma.hbm_to_vmem [thread:$0]  %s17, 512, %s19, [#allocation3]
    $region5: #{tpu_custom_call.1} parent=1 // pred_fallthru
      _
    // Predicated region
    $region6: #{tpu_custom_call.1} parent=1 // pred_check
      _
    $region7: #{tpu_custom_call.1} parent=1 // pred_check_branch
      %23 = sbr.rel (0) target = $region9
    $region8: #{tpu_custom_call.1} parent=1 // pred_region
      %25 = vsyncadd [#allocation5], 0
      %s26 = sshll.u32 %s1, 4
      %s27 = int_to_ptr.hbm [resolvable:$true] %s26
      %s28 = sshll.u32 [#allocation4], 4
      %s29 = int_to_ptr.vmem [resolvable:$true] %s28
      %34 = dma.hbm_to_vmem [thread:$0]  %s27, 8192, %s29, [#allocation5], 128, 128, 8
    $region9: #{tpu_custom_call.1} parent=1 // pred_fallthru
      _
    // Predicated region
    $region10: #{tpu_custom_call.1} parent=1 // pred_check
      _
    $region11: #{tpu_custom_call.1} parent=1 // pred_check_branch
      %36 = sbr.rel (0) target = $region13
    $region12: #{tpu_custom_call.1} parent=1 // pred_region
      _
    $region13: #{tpu_custom_call.1} parent=1 // pred_fallthru
      _
    // Predicated region
    $region14: #{tpu_custom_call.1} parent=1 // pred_check
      _
    $region15: #{tpu_custom_call.1} parent=1 // pred_check_branch
      %38 = sbr.rel (0) target = $region17
    $region16: #{tpu_custom_call.1} parent=1 // pred_region
      _
    $region17: #{tpu_custom_call.1} parent=1 // pred_fallthru
      _
    // Predicated region
    $region18: #{tpu_custom_call.1} parent=1 // pred_check
      _
    $region19: #{tpu_custom_call.1} parent=1 // pred_check_branch
      %40 = sbr.rel (0) target = $region21
    $region20: #{tpu_custom_call.1} parent=1 // pred_region
      %42 = dma.done [#allocation3], 512
    $region21: #{tpu_custom_call.1} parent=1 // pred_fallthru
      _
    // Predicated region
    $region22: #{tpu_custom_call.1} parent=1 // pred_check
      _
    $region23: #{tpu_custom_call.1} parent=1 // pred_check_branch
      %44 = sbr.rel (0) target = $region25
    $region24: #{tpu_custom_call.1} parent=1 // pred_region
      %46 = dma.done [#allocation5], 8192
    $region25: #{tpu_custom_call.1} parent=1 // pred_fallthru
      _
    %v47 = vld [vmem:[#allocation2] sm:$0xff]
    %v48 = vld [vmem:[#allocation2 + $0x8] sm:$0xff]
    %v49 = vld [vmem:[#allocation2 + $0x10] sm:$0xff]
    %v50 = vld [vmem:[#allocation2 + $0x18] sm:$0xff]
    %v51 = vld [vmem:[#allocation4] sm:$0xff]
    %v52 = vld [vmem:[#allocation4 + $0x8] sm:$0xff]
    %v53 = vld [vmem:[#allocation4 + $0x10] sm:$0xff]
    %v54 = vld [vmem:[#allocation4 + $0x18] sm:$0xff]
    %v55 = vld [vmem:[#allocation4 + $0x20] sm:$0xff]
    %v56 = vld [vmem:[#allocation4 + $0x28] sm:$0xff]
    %v57 = vld [vmem:[#allocation4 + $0x30] sm:$0xff]
    %v58 = vld [vmem:[#allocation4 + $0x38] sm:$0xff]
    %v59 = vld [vmem:[#allocation4 + $0x40] sm:$0xff]
    %v60 = vld [vmem:[#allocation4 + $0x48] sm:$0xff]
    %v61 = vld [vmem:[#allocation4 + $0x50] sm:$0xff]
    %v62 = vld [vmem:[#allocation4 + $0x58] sm:$0xff]
    %v63 = vld [vmem:[#allocation4 + $0x60] sm:$0xff]
    %v64 = vld [vmem:[#allocation4 + $0x68] sm:$0xff]
    %v65 = vld [vmem:[#allocation4 + $0x70] sm:$0xff]
    %v66 = vld [vmem:[#allocation4 + $0x78] sm:$0xff]
    %v67 = vld [vmem:[#allocation4 + $0x80] sm:$0xff]
    %v68 = vld [vmem:[#allocation4 + $0x88] sm:$0xff]
    %v69 = vld [vmem:[#allocation4 + $0x90] sm:$0xff]
    %v70 = vld [vmem:[#allocation4 + $0x98] sm:$0xff]
    %v71 = vld [vmem:[#allocation4 + $0xa0] sm:$0xff]
    %v72 = vld [vmem:[#allocation4 + $0xa8] sm:$0xff]
    %v73 = vld [vmem:[#allocation4 + $0xb0] sm:$0xff]
    %v74 = vld [vmem:[#allocation4 + $0xb8] sm:$0xff]
    %v75 = vld [vmem:[#allocation4 + $0xc0] sm:$0xff]
    %v76 = vld [vmem:[#allocation4 + $0xc8] sm:$0xff]
    %v77 = vld [vmem:[#allocation4 + $0xd0] sm:$0xff]
    %v78 = vld [vmem:[#allocation4 + $0xd8] sm:$0xff]
    %v79 = vld [vmem:[#allocation4 + $0xe0] sm:$0xff]
    %v80 = vld [vmem:[#allocation4 + $0xe8] sm:$0xff]
    %v81 = vld [vmem:[#allocation4 + $0xf0] sm:$0xff]
    %v82 = vld [vmem:[#allocation4 + $0xf8] sm:$0xff]
    %v83 = vld [vmem:[#allocation4 + $0x100] sm:$0xff]
    %v84 = vld [vmem:[#allocation4 + $0x108] sm:$0xff]
    %v85 = vld [vmem:[#allocation4 + $0x110] sm:$0xff]
    %v86 = vld [vmem:[#allocation4 + $0x118] sm:$0xff]
    %v87 = vld [vmem:[#allocation4 + $0x120] sm:$0xff]
    %v88 = vld [vmem:[#allocation4 + $0x128] sm:$0xff]
    %v89 = vld [vmem:[#allocation4 + $0x130] sm:$0xff]
    %v90 = vld [vmem:[#allocation4 + $0x138] sm:$0xff]
    %v91 = vld [vmem:[#allocation4 + $0x140] sm:$0xff]
    %v92 = vld [vmem:[#allocation4 + $0x148] sm:$0xff]
    %v93 = vld [vmem:[#allocation4 + $0x150] sm:$0xff]
    %v94 = vld [vmem:[#allocation4 + $0x158] sm:$0xff]
    %v95 = vld [vmem:[#allocation4 + $0x160] sm:$0xff]
    %v96 = vld [vmem:[#allocation4 + $0x168] sm:$0xff]
    %v97 = vld [vmem:[#allocation4 + $0x170] sm:$0xff]
    %v98 = vld [vmem:[#allocation4 + $0x178] sm:$0xff]
    %v99 = vld [vmem:[#allocation4 + $0x180] sm:$0xff]
    %v100 = vld [vmem:[#allocation4 + $0x188] sm:$0xff]
    %v101 = vld [vmem:[#allocation4 + $0x190] sm:$0xff]
    %v102 = vld [vmem:[#allocation4 + $0x198] sm:$0xff]
    %v103 = vld [vmem:[#allocation4 + $0x1a0] sm:$0xff]
    %v104 = vld [vmem:[#allocation4 + $0x1a8] sm:$0xff]
    %v105 = vld [vmem:[#allocation4 + $0x1b0] sm:$0xff]
    %v106 = vld [vmem:[#allocation4 + $0x1b8] sm:$0xff]
    %v107 = vld [vmem:[#allocation4 + $0x1c0] sm:$0xff]
    %v108 = vld [vmem:[#allocation4 + $0x1c8] sm:$0xff]
    %v109 = vld [vmem:[#allocation4 + $0x1d0] sm:$0xff]
    %v110 = vld [vmem:[#allocation4 + $0x1d8] sm:$0xff]
    %v111 = vld [vmem:[#allocation4 + $0x1e0] sm:$0xff]
    %v112 = vld [vmem:[#allocation4 + $0x1e8] sm:$0xff]
    %v113 = vld [vmem:[#allocation4 + $0x1f0] sm:$0xff]
    %v114 = vld [vmem:[#allocation4 + $0x1f8] sm:$0xff]
    %v115 = vld [vmem:[%s2] sm:$0x1]
    %v117 = vperm.slane %v115, 0
    %119 = vmatpush.msra.mxu0 %v66
    %120 = vmatpush.msra.mxu0 %v65
    %121 = vmatpush.msra.mxu0 %v64
    %122 = vmatpush.msra.mxu0 %v63
    %123 = vmatpush.msra.mxu0 %v62
    %124 = vmatpush.msra.mxu0 %v61
    %125 = vmatpush.msra.mxu0 %v60
    %126 = vmatpush.msra.mxu0 %v59
    %127 = vmatpush.msra.mxu0 %v58
    %128 = vmatpush.msra.mxu0 %v57
    %129 = vmatpush.msra.mxu0 %v56
    %130 = vmatpush.msra.mxu0 %v55
    %131 = vmatpush.msra.mxu0 %v54
    %132 = vmatpush.msra.mxu0 %v53
    %133 = vmatpush.msra.mxu0 %v52
    %134 = vmatpush.msra.mxu0 %v51
    %135 = vmatmul.f32.gmra.mxu0 %v47
    %v136 = vpop.f32.mrf.mxu0
    %v137 = vadd.f32 %v117, %v136
    %138 = vdwg.mxu0
    %139 = vmatpush.msra.mxu0 %v82
    %140 = vmatpush.msra.mxu0 %v81
    %141 = vmatpush.msra.mxu0 %v80
    %142 = vmatpush.msra.mxu0 %v79
    %143 = vmatpush.msra.mxu0 %v78
    %144 = vmatpush.msra.mxu0 %v77
    %145 = vmatpush.msra.mxu0 %v76
    %146 = vmatpush.msra.mxu0 %v75
    %147 = vmatpush.msra.mxu0 %v74
    %148 = vmatpush.msra.mxu0 %v73
    %149 = vmatpush.msra.mxu0 %v72
    %150 = vmatpush.msra.mxu0 %v71
    %151 = vmatpush.msra.mxu0 %v70
    %152 = vmatpush.msra.mxu0 %v69
    %153 = vmatpush.msra.mxu0 %v68
    %154 = vmatpush.msra.mxu0 %v67
    %155 = vmatmul.f32.gmra.mxu0 %v48
    %v156 = vpop.f32.mrf.mxu0
    %v157 = vadd.f32 %v137, %v156
    %158 = vdwg.mxu0
    %159 = vmatpush.msra.mxu0 %v98
    %160 = vmatpush.msra.mxu0 %v97
    %161 = vmatpush.msra.mxu0 %v96
    %162 = vmatpush.msra.mxu0 %v95
    %163 = vmatpush.msra.mxu0 %v94
    %164 = vmatpush.msra.mxu0 %v93
    %165 = vmatpush.msra.mxu0 %v92
    %166 = vmatpush.msra.mxu0 %v91
    %167 = vmatpush.msra.mxu0 %v90
    %168 = vmatpush.msra.mxu0 %v89
    %169 = vmatpush.msra.mxu0 %v88
    %170 = vmatpush.msra.mxu0 %v87
    %171 = vmatpush.msra.mxu0 %v86
    %172 = vmatpush.msra.mxu0 %v85
    %173 = vmatpush.msra.mxu0 %v84
    %174 = vmatpush.msra.mxu0 %v83
    %175 = vmatmul.f32.gmra.mxu0 %v49
    %v176 = vpop.f32.mrf.mxu0
    %v177 = vadd.f32 %v157, %v176
    %178 = vdwg.mxu0
    %179 = vmatpush.msra.mxu0 %v114
    %180 = vmatpush.msra.mxu0 %v113
    %181 = vmatpush.msra.mxu0 %v112
    %182 = vmatpush.msra.mxu0 %v111
    %183 = vmatpush.msra.mxu0 %v110
    %184 = vmatpush.msra.mxu0 %v109
    %185 = vmatpush.msra.mxu0 %v108
    %186 = vmatpush.msra.mxu0 %v107
    %187 = vmatpush.msra.mxu0 %v106
    %188 = vmatpush.msra.mxu0 %v105
    %189 = vmatpush.msra.mxu0 %v104
    %190 = vmatpush.msra.mxu0 %v103
    %191 = vmatpush.msra.mxu0 %v102
    %192 = vmatpush.msra.mxu0 %v101
    %193 = vmatpush.msra.mxu0 %v100
    %194 = vmatpush.msra.mxu0 %v99
    %195 = vmatmul.f32.gmra.mxu0 %v50
    %v196 = vpop.f32.mrf.mxu0
    %v197 = vadd.f32 %v177, %v196
    %198 = vdwg.mxu0
    %199 = vmax.xlane.f32.xlu0 %v197
    %v200 = vpop.xlane.xlu0 %199
    %v201 = vsub.f32 %v197, %v200
    %v202 = vmul.f32 %v201, 1.442695
    %v203 = vpow.pop %v202
    %204 = vadd.xlane.f32.xlu0 %v203
    %v205 = vpop.xlane.xlu0 %204
    %v206 = vlog2.pop %v205
    %v207 = vmul.f32 %v206, 0.6931472
    %v208 = vadd.f32 %v200, %v207
    %v209 = vld [vmem:[%s3] sm:$0xff]
    %v210 = vlaneseq
    %v211 = vand.u32 %v210, 127
    %212 = vset.pattern.permute.xlu0 0
    %213 = vperm.xlu0 %212, %v209
    %v214 = vpop.permute.xlu0 %213
    %vm215 = vcmp.eq.s32.totalorder %v211, %v214
    %v216 = vsel %vm215, %v197, 0.0
    %217 = vadd.xlane.f32.xlu0 %v216
    %v218 = vpop.xlane.xlu0 %217
    %v219 = vsub.f32 %v208, %v218
    %vm220 = vcmask 7168
    %221 = vst.msk [vmem:[%s4] sm:$0xff] %vm220, %v219
    // Predicated region
    $region26: #{tpu_custom_call.1} parent=1 // pred_check
      _
    $region27: #{tpu_custom_call.1} parent=1 // pred_check_branch
      %223 = sbr.rel (0) target = $region29
    $region28: #{tpu_custom_call.1} parent=1 // pred_region
      _
    $region29: #{tpu_custom_call.1} parent=1 // pred_fallthru
      _
    // Predicated region
    $region30: #{tpu_custom_call.1} parent=1 // pred_check
      _
    $region31: #{tpu_custom_call.1} parent=1 // pred_check_branch
      %225 = sbr.rel (0) target = $region33
    $region32: #{tpu_custom_call.1} parent=1 // pred_region
      _
    $region33: #{tpu_custom_call.1} parent=1 // pred_fallthru
      _
    %226 = vsyncpa [#allocation3], 1
    %227 = vsyncpa [#allocation5], 1

</llo_original>
